<compile_context>
chip_gen: v5e
topology: v5e:2x2
jax: 0.10.0
libtpu: 0.0.40
codegen_flags: <defaults>
</compile_context>

<pallas_src>
import jax
import jax.numpy as jnp
from jax.experimental import pallas as pl
from jax.experimental.pallas import tpu as pltpu


def _wrong_loss_partial_kernel(pred_ref, tgt_ref, out_ref):
    """Per-block partial KL sum. out_ref: (1, 8, 128) lane-dense slab."""
    pred = pred_ref[...].astype(jnp.float32)   # [TILE_N, C]
    tgt = tgt_ref[...].astype(jnp.float32)     # [TILE_N, C]

    s = jnp.sum(tgt, axis=1, keepdims=True)                           # [TILE_N, 1]
    m = jnp.max(pred, axis=1, keepdims=True)                          # [TILE_N, 1]
    lse = jnp.log(jnp.sum(jnp.exp(pred - m), axis=1, keepdims=True))  # [TILE_N, 1]

    # xlogy(tgt, tgt) with a single select: non-positive tgt contributes 0.
    a = jnp.sum(tgt * jnp.log(jnp.where(tgt > 0.0, tgt, 1.0)),
                axis=1, keepdims=True)                                # [TILE_N, 1]
    b = jnp.sum(tgt * pred, axis=1, keepdims=True)                    # [TILE_N, 1]

    safe_s = jnp.where(s > 0.0, s, 1.0)
    row = (a - b) / safe_s + (m + lse - jnp.log(safe_s))
    row = jnp.where(s > 0.0, row, 0.0)   # zero-sum rows (incl. padding) -> 0

    # Per-block partial sum, broadcast into the lane-dense output slab.
    out_ref[...] = jnp.full(out_ref.shape, jnp.sum(row), dtype=jnp.float32)


def _vmem_limit_bytes():
    """Generation-aware scoped-VMEM limit."""
    try:
        kind = jax.devices()[0].device_kind.lower()
    except Exception:
        kind = ""
    if "v5" in kind or "v6" in kind:
        return 64 * 1024 * 1024      # 128 MiB physical VMEM -> generous scoped limit
    return 48 * 1024 * 1024          # v7x-safe (64 MiB physical per TC); safe default


def _pick_tile_n(n, c, itemsize, vmem_limit):
    """Rows per tile sized by bytes (dtype-aware), multiple of 8, >= 2 blocks."""
    # Per-row footprint: 2 inputs x 2 pipeline buffers (input dtype)
    # + ~4 live f32 [TILE_N, C] temporaries inside the kernel body.
    per_row = c * (4 * itemsize + 4 * 4)
    budget = int(0.6 * vmem_limit)              # headroom for output slabs / regalloc
    tile = max(8, (budget // max(per_row, 1)) // 8 * 8)
    n_rounded = ((n + 7) // 8) * 8
    tile = min(tile, n_rounded)
    # v7x megacore: make sure the "parallel" batch axis gets >= 2 grid blocks.
    if n_rounded >= 16:
        tile = min(tile, max(8, (n_rounded // 2) // 8 * 8))
    return max(8, tile)


def _wrong_loss_ref(pred, target):
    """Pure-JAX reference (also the fallback path for tiny / vocab-scale shapes)."""
    pred = pred.astype(jnp.float32)
    target = target.astype(jnp.float32)
    n, c = pred.shape
    tar_sum = jnp.sum(target, axis=1, keepdims=True)
    tar_sum = jnp.where(tar_sum == 0.0, 1e-6, tar_sum)
    tar = target / tar_sum
    log_sm = jax.nn.log_softmax(pred, axis=1)
    safe_tar = jnp.where(tar > 0.0, tar, 1.0)
    term = jnp.where(tar > 0.0, tar * (jnp.log(safe_tar) - log_sm), 0.0)
    return (jnp.sum(term) / jnp.float32(n * c)) * jnp.float32(c)


def wrong_loss(pred_score, target_score, tile_n=None, force_pallas=False):
    """pred_score, target_score: [N, C] arrays (f32 or bf16). Returns f32 scalar."""
    n, c = pred_score.shape
    itemsize = jnp.dtype(pred_score.dtype).itemsize
    vmem_limit = _vmem_limit_bytes()

    # Tiny problems: ~one (8,128) tile of real work or less -> XLA fusion wins.
    if not force_pallas and n * c < 128 * 128:
        return _wrong_loss_ref(pred_score, target_score)

    # Vocab-scale C: a full class row per block would not fit VMEM even at 8 rows.
    # TODO(synk): add a C-tiled online-log-softmax kernel path for vocab-scale C.
    if c * (4 * itemsize + 16) * 8 > int(0.8 * vmem_limit):
        return _wrong_loss_ref(pred_score, target_score)

    if tile_n is None:
        tile_n = _pick_tile_n(n, c, itemsize, vmem_limit)

    # Zero-pad the batch axis to a multiple of tile_n (padded rows contribute 0).
    n_pad = pl.cdiv(n, tile_n) * tile_n
    if n_pad != n:
        pad = ((0, n_pad - n), (0, 0))
        pred_score = jnp.pad(pred_score, pad)
        target_score = jnp.pad(target_score, pad)
    num_blocks = n_pad // tile_n

    partials = pl.pallas_call(
        _wrong_loss_partial_kernel,
        out_shape=jax.ShapeDtypeStruct((num_blocks, 8, 128), jnp.float32),
        grid=(num_blocks,),
        in_specs=[
            pl.BlockSpec((tile_n, c), lambda i: (i, 0)),
            pl.BlockSpec((tile_n, c), lambda i: (i, 0)),
        ],
        out_specs=pl.BlockSpec((1, 8, 128), lambda i: (i, 0, 0)),
        compiler_params=pltpu.CompilerParams(
            dimension_semantics=("parallel",),
            vmem_limit_bytes=vmem_limit,
        ),
    )(pred_score, target_score)

    total = jnp.sum(partials[:, 0, 0])
    # Keep PyTorch rounding order: mean over ORIGINAL N*C elements, then * C.
    return (total / jnp.float32(n * c)) * jnp.float32(c)


if __name__ == "__main__":
    key = jax.random.PRNGKey(0)
    k_pred, k_tgt, k_pred2, k_tgt2 = jax.random.split(key, 4)

    # Small [batch, classes] loss; N=20 exercises padding to 24, zero row
    # exercises the tar_sum==0 -> 1e-6 path. force_pallas exercises the kernel.
    N, C = 20, 32
    pred = jax.random.normal(k_pred, (N, C), dtype=jnp.float32)
    target = jax.random.uniform(k_tgt, (N, C), dtype=jnp.float32)
    target = target.at[3].set(0.0)

    loss = jax.block_until_ready(wrong_loss(pred, target, force_pallas=True))
    ref = jax.block_until_ready(_wrong_loss_ref(pred, target))
    if not jnp.allclose(loss, ref, rtol=1e-4, atol=1e-5):
        raise AssertionError(f"mismatch (small): kernel={loss} ref={ref}")

    # Larger shape: exercises the byte-budget tile picker + >=2-block grid.
    N2, C2 = 384, 256
    pred2 = jax.random.normal(k_pred2, (N2, C2), dtype=jnp.float32)
    target2 = jax.random.uniform(k_tgt2, (N2, C2), dtype=jnp.float32)
    loss2 = jax.block_until_ready(wrong_loss(pred2, target2))
    ref2 = jax.block_until_ready(_wrong_loss_ref(pred2, target2))
    if not jnp.allclose(loss2, ref2, rtol=1e-4, atol=1e-5):
        raise AssertionError(f"mismatch (large): kernel={loss2} ref={ref2}")

    print("KERNEL_OK")
</pallas_src>

<mosaic_0001>
module attributes {stable_mosaic.version = 11 : i64} {
  func.func @_wrong_loss_partial_kernel(%arg0: i32, %arg1: memref<8x32xf32, #tpu.memory_space<vmem>>, %arg2: memref<8x32xf32, #tpu.memory_space<vmem>>, %arg3: memref<1x8x128xf32, #tpu.memory_space<vmem>>) attributes {dimension_semantics = [#tpu.dimension_semantics<parallel>], iteration_bounds = array<i64: 3>, scalar_prefetch = 0 : i64, scratch_operands = 0 : i64, tpu.core_type = #tpu.core_type<tc>, window_params = [{transform_indices = @transform_0, window_bounds = array<i64: 8, 32>}, {transform_indices = @transform_1, window_bounds = array<i64: 8, 32>}, {transform_indices = @transform_2, window_bounds = array<i64: 1, 8, 128>}]} {
    %c0 = arith.constant 0 : index
    %c0_0 = arith.constant 0 : index
    %0 = vector.load %arg1[%c0, %c0_0] : memref<8x32xf32, #tpu.memory_space<vmem>>, vector<8x32xf32>
    %c0_1 = arith.constant 0 : index
    %c0_2 = arith.constant 0 : index
    %1 = vector.load %arg2[%c0_1, %c0_2] : memref<8x32xf32, #tpu.memory_space<vmem>>, vector<8x32xf32>
    %cst = arith.constant dense<0.000000e+00> : vector<8xf32>
    %2 = vector.multi_reduction <add>, %1, %cst [1] : vector<8x32xf32> to vector<8xf32>
    %3 = vector.shape_cast %2 : vector<8xf32> to vector<8x1xf32>
    %cst_3 = arith.constant dense<0xFF800000> : vector<8xf32>
    %4 = vector.multi_reduction <maximumf>, %0, %cst_3 [1] : vector<8x32xf32> to vector<8xf32>
    %5 = vector.shape_cast %4 : vector<8xf32> to vector<8x1xf32>
    %6 = vector.broadcast %5 : vector<8x1xf32> to vector<8x32xf32>
    %7 = arith.subf %0, %6 : vector<8x32xf32>
    %8 = math.exp %7 : vector<8x32xf32>
    %cst_4 = arith.constant dense<0.000000e+00> : vector<8xf32>
    %9 = vector.multi_reduction <add>, %8, %cst_4 [1] : vector<8x32xf32> to vector<8xf32>
    %10 = vector.shape_cast %9 : vector<8xf32> to vector<8x1xf32>
    %11 = math.log %10 : vector<8x1xf32>
    %cst_5 = arith.constant 0.000000e+00 : f32
    %12 = vector.broadcast %cst_5 : f32 to vector<8x32xf32>
    %13 = arith.cmpf ogt, %1, %12 : vector<8x32xf32>
    %cst_6 = arith.constant 1.000000e+00 : f32
    %14 = vector.broadcast %cst_6 : f32 to vector<8x32xf32>
    %15 = arith.select %13, %1, %14 : vector<8x32xi1>, vector<8x32xf32>
    %16 = math.log %15 : vector<8x32xf32>
    %17 = arith.mulf %1, %16 : vector<8x32xf32>
    %cst_7 = arith.constant dense<0.000000e+00> : vector<8xf32>
    %18 = vector.multi_reduction <add>, %17, %cst_7 [1] : vector<8x32xf32> to vector<8xf32>
    %19 = vector.shape_cast %18 : vector<8xf32> to vector<8x1xf32>
    %20 = arith.mulf %1, %0 : vector<8x32xf32>
    %cst_8 = arith.constant dense<0.000000e+00> : vector<8xf32>
    %21 = vector.multi_reduction <add>, %20, %cst_8 [1] : vector<8x32xf32> to vector<8xf32>
    %22 = vector.shape_cast %21 : vector<8xf32> to vector<8x1xf32>
    %cst_9 = arith.constant 0.000000e+00 : f32
    %23 = vector.broadcast %cst_9 : f32 to vector<8x1xf32>
    %24 = arith.cmpf ogt, %3, %23 : vector<8x1xf32>
    %cst_10 = arith.constant 1.000000e+00 : f32
    %25 = vector.broadcast %cst_10 : f32 to vector<8x1xf32>
    %26 = arith.select %24, %3, %25 : vector<8x1xi1>, vector<8x1xf32>
    %27 = arith.subf %19, %22 : vector<8x1xf32>
    %28 = arith.divf %27, %26 : vector<8x1xf32>
    %29 = arith.addf %5, %11 : vector<8x1xf32>
    %30 = math.log %26 : vector<8x1xf32>
    %31 = arith.subf %29, %30 : vector<8x1xf32>
    %32 = arith.addf %28, %31 : vector<8x1xf32>
    %cst_11 = arith.constant 0.000000e+00 : f32
    %33 = vector.broadcast %cst_11 : f32 to vector<8x1xf32>
    %34 = arith.cmpf ogt, %3, %33 : vector<8x1xf32>
    %cst_12 = arith.constant 0.000000e+00 : f32
    %35 = vector.broadcast %cst_12 : f32 to vector<8x1xf32>
    %36 = arith.select %34, %32, %35 : vector<8x1xi1>, vector<8x1xf32>
    %37 = vector.shape_cast %36 : vector<8x1xf32> to vector<1x8x1xf32>
    %cst_13 = arith.constant dense<0.000000e+00> : vector<1xf32>
    %38 = vector.multi_reduction <add>, %37, %cst_13 [1, 2] : vector<1x8x1xf32> to vector<1xf32>
    %39 = vector.shape_cast %38 : vector<1xf32> to vector<1x1x1xf32>
    %40 = vector.extract %39[0, 0, 0] : f32 from vector<1x1x1xf32>
    %41 = vector.broadcast %40 : f32 to vector<1x8x128xf32>
    %c0_14 = arith.constant 0 : index
    %c0_15 = arith.constant 0 : index
    %c0_16 = arith.constant 0 : index
    %42 = vector.load %arg3[%c0_14, %c0_15, %c0_16] : memref<1x8x128xf32, #tpu.memory_space<vmem>>, vector<1x8x128xf32>
    tpu.vector_store %arg3[%c0_14, %c0_15, %c0_16], %41 {strides = array<i32>} : memref<1x8x128xf32, #tpu.memory_space<vmem>>, vector<1x8x128xf32>,
    return
  }
  func.func @transform_0(%arg0: i32) -> (i32, i32) {
    %c0_i32 = arith.constant 0 : i32
    %c0_i32_0 = arith.constant 0 : i32
    return %arg0, %c0_i32 : i32, i32
  }
  func.func @transform_1(%arg0: i32) -> (i32, i32) {
    %c0_i32 = arith.constant 0 : i32
    %c0_i32_0 = arith.constant 0 : i32
    return %arg0, %c0_i32 : i32, i32
  }
  func.func @transform_2(%arg0: i32) -> (i32, i32, i32) {
    %c0_i32 = arith.constant 0 : i32
    %c0_i32_0 = arith.constant 0 : i32
    %c0_i32_1 = arith.constant 0 : i32
    return %arg0, %c0_i32, %c0_i32_0 : i32, i32, i32
  }
}

</mosaic_0001>

<llo_original>
// kernel: tpu_custom_call.1
$region0: #{tpu_custom_call.1}
  #allocation0 [shape = 'u32[]', space=smem, size = 0x4, offset = 0x4, fixed_abs, tag = 'smem constant byte address 0x4 - core index']
  #allocation1 [shape = 'u32[72,128]{1,0:T(1,128)}', space=vmem, size = 0x9000, scoped, tag = 'internal scratch']
  %s0 = inlined_call_operand.hbm [shape: f32[24,32], index: 0, kind: input, shape index: {}]
  %s1 = inlined_call_operand.hbm [shape: f32[24,32], index: 1, kind: input, shape index: {}]
  %s2 = inlined_call_operand.hbm [shape: f32[3,8,128], index: 2, kind: output, shape index: {}]
  %s3 = sld [smem:[#allocation0]]
  $region49: #{tpu_custom_call.1} parent=0
    _
  %s5 = ssub.s32 1, %s3
  %s6 = scalar_select 0, %s5, %s3
  $region1: #{tpu_custom_call.1} parent=0
    #allocation2 [shape = 'u8[8192]{0}', space=vmem, size = 0x2000, scoped, tag = 'input window, operand 0']
    #allocation3 [shape = 's32[2]{0}', space=sflag, size = 0x8, scoped, tag = 'scoped memory for tpu_custom_call.1']
    #allocation4 [shape = 's32[2]{0}', space=sflag, size = 0x8, scoped, tag = 'scoped memory for tpu_custom_call.1']
    #allocation5 [shape = 'u8[8192]{0}', space=vmem, size = 0x2000, scoped, tag = 'input window, operand 1']
    #allocation6 [shape = 's32[2]{0}', space=sflag, size = 0x8, scoped, tag = 'scoped memory for tpu_custom_call.1']
    #allocation7 [shape = 'u8[8192]{0}', space=vmem, size = 0x2000, scoped, tag = 'output window, operand 0']
    %7 = vsyncpa [#allocation3], 0
    %s8 = scalar_lea.sflag [#allocation3], 1
    %9 = vsyncpa %s8, 0
    %10 = vsyncpa [#allocation6], 0
    %s11 = scalar_lea.sflag [#allocation6], 1
    %12 = vsyncpa %s11, 0
    %13 = vsyncpa [#allocation4], 0
    %s14 = scalar_lea.sflag [#allocation4], 1
    %15 = vsyncpa %s14, 0
    loop: start=0, step=1, limit=5
    $region2: #{tpu_custom_call.1} parent=1 // loop_pre_header
      _
    $region3: #{tpu_custom_call.1} parent=1 // loop_header
      %s17 = sphi 0, %s21
      %p18 = scmp.ge.s32.totalorder %s17, 5
      %s27 = sphi 0, %s29
      %s30 = sphi 0, %s27
      %s31 = sphi 0, %s30
      %s47 = sphi 0, %s31
      %s53 = sphi 0, %s55
      %s56 = sphi 0, %s53
      %s57 = sphi 0, %s56
      %s73 = sphi 0, %s57
      %s79 = sphi 0, %s81
      %s82 = sphi 0, %s79
      %s83 = sphi 0, %s82
      %s99 = sphi 0, %s83
    $region4: #{tpu_custom_call.1} parent=1 // loop_header_branch
      %20 = sbr.rel (%p18) target = $region8
    $region5: #{tpu_custom_call.1} parent=1 // loop_body
      %s22 = ssub.s32 %s17, 1
      %s23 = ssub.s32 %s17, 2
      %s24 = sadd.s32 %s17, 1
      %s25 = ssub.s32 %s17, %s24
      %p26 = scmp.eq.s32.totalorder %s25, 0
      %s28 = sadd.s32 %s27, 1
      %s29 = scalar_select %p26, %s27, %s28
      %p32 = pneg %p26
      %p33 = scmp.eq.s32.totalorder %s17, 2
      %p34 = por %p32, %p33
      %p35 = scmp.ne.s32.totalorder %s27, %s30
      %p36 = scmp.eq.s32.totalorder %s17, 0
      %p37 = por %p35, %p36
      %p38 = scmp.ne.s32.totalorder %s27, %s30
      %p39 = scmp.eq.s32.totalorder %s22, 2
      %p40 = por %p38, %p39
      %p41 = scmp.ne.s32.totalorder %s30, %s31
      %p42 = scmp.eq.s32.totalorder %s22, 0
      %p43 = por %p41, %p42
      %p44 = scmp.ne.s32.totalorder %s30, %s31
      %p45 = scmp.eq.s32.totalorder %s23, 2
      %p46 = por %p44, %p45
      %p48 = scmp.ne.s32.totalorder %s31, %s47
      %p49 = scmp.eq.s32.totalorder %s23, 0
      %p50 = por %p48, %p49
      %s51 = ssub.s32 %s17, %s24
      %p52 = scmp.eq.s32.totalorder %s51, 0
      %s54 = sadd.s32 %s53, 1
      %s55 = scalar_select %p52, %s53, %s54
      %p58 = pneg %p52
      %p59 = scmp.eq.s32.totalorder %s17, 2
      %p60 = por %p58, %p59
      %p61 = scmp.ne.s32.totalorder %s53, %s56
      %p62 = scmp.eq.s32.totalorder %s17, 0
      %p63 = por %p61, %p62
      %p64 = scmp.ne.s32.totalorder %s53, %s56
      %p65 = scmp.eq.s32.totalorder %s22, 2
      %p66 = por %p64, %p65
      %p67 = scmp.ne.s32.totalorder %s56, %s57
      %p68 = scmp.eq.s32.totalorder %s22, 0
      %p69 = por %p67, %p68
      %p70 = scmp.ne.s32.totalorder %s56, %s57
      %p71 = scmp.eq.s32.totalorder %s23, 2
      %p72 = por %p70, %p71
      %p74 = scmp.ne.s32.totalorder %s57, %s73
      %p75 = scmp.eq.s32.totalorder %s23, 0
      %p76 = por %p74, %p75
      %s77 = ssub.s32 %s17, %s24
      %p78 = scmp.eq.s32.totalorder %s77, 0
      %s80 = sadd.s32 %s79, 1
      %s81 = scalar_select %p78, %s79, %s80
      %p84 = pneg %p78
      %p85 = scmp.eq.s32.totalorder %s17, 2
      %p86 = por %p84, %p85
      %p87 = scmp.ne.s32.totalorder %s79, %s82
      %p88 = scmp.eq.s32.totalorder %s17, 0
      %p89 = por %p87, %p88
      %p90 = scmp.ne.s32.totalorder %s79, %s82
      %p91 = scmp.eq.s32.totalorder %s22, 2
      %p92 = por %p90, %p91
      %p93 = scmp.ne.s32.totalorder %s82, %s83
      %p94 = scmp.eq.s32.totalorder %s22, 0
      %p95 = por %p93, %p94
      %p96 = scmp.ne.s32.totalorder %s82, %s83
      %p97 = scmp.eq.s32.totalorder %s23, 2
      %p98 = por %p96, %p97
      %p100 = scmp.ne.s32.totalorder %s83, %s99
      %p101 = scmp.eq.s32.totalorder %s23, 0
      %p102 = por %p100, %p101
      %p103 = scmp.le.s32.totalorder 1, %s17
      %p104 = scmp.lt.s32.totalorder %s17, 4
      %p105 = pnand %p103, %p104
      %p106 = pneg %p105
      // Predicated region
      $region9: #{tpu_custom_call.1} parent=5 // pred_check
        _
      $region10: #{tpu_custom_call.1} parent=5 // pred_check_branch
        %108 = sbr.rel (%p105) target = $region12
      $region11: #{tpu_custom_call.1} parent=5 // pred_region
        %s109 = ssub.s32 %s17, 1
      $region12: #{tpu_custom_call.1} parent=5 // pred_fallthru
        _
      %p110 = scmp.lt.s32.totalorder %s17, 3
      // Predicated region
      $region13: #{tpu_custom_call.1} parent=5 // pred_check
        %p111 = pneg %p110
      $region14: #{tpu_custom_call.1} parent=5 // pred_check_branch
        %113 = sbr.rel (%p111) target = $region16
      $region15: #{tpu_custom_call.1} parent=5 // pred_region
        // Predicated region
        $region17: #{tpu_custom_call.1} parent=15 // pred_check
          %p114 = pneg %p37
        $region18: #{tpu_custom_call.1} parent=15 // pred_check_branch
          %116 = sbr.rel (%p114) target = $region20
        $region19: #{tpu_custom_call.1} parent=15 // pred_region
          %s117 = sand.u32 %s27, 1
          %s118 = scalar_lea.sflag [#allocation3], %s117
          %s119 = sand.u32 %s27, 1
          %s120 = smul.addr %s119, 8
          %s121 = scalar_lea.vmem [#allocation2], %s120
          %123 = vsyncadd %s118, 0
          %s124 = smul.addr %s17, 8
          %s125 = scalar_lea.hbm %s0, %s124
          %s127 = sshll.u32 %s125, 4
          %s128 = int_to_ptr.hbm [resolvable:$true] %s127
          %s129 = sshll.u32 %s121, 4
          %s130 = int_to_ptr.vmem [resolvable:$true] %s129
          %132 = dma.hbm_to_vmem [thread:$0]  %s128, 128, %s130, %s118
        $region20: #{tpu_custom_call.1} parent=15 // pred_fallthru
          _
        // Predicated region
        $region21: #{tpu_custom_call.1} parent=15 // pred_check
          %p133 = pneg %p63
        $region22: #{tpu_custom_call.1} parent=15 // pred_check_branch
          %135 = sbr.rel (%p133) target = $region24
        $region23: #{tpu_custom_call.1} parent=15 // pred_region
          %s136 = sand.u32 %s53, 1
          %s137 = scalar_lea.sflag [#allocation6], %s136
          %s138 = sand.u32 %s53, 1
          %s139 = smul.addr %s138, 8
          %s140 = scalar_lea.vmem [#allocation5], %s139
          %142 = vsyncadd %s137, 0
          %s143 = smul.addr %s17, 8
          %s144 = scalar_lea.hbm %s1, %s143
          %s146 = sshll.u32 %s144, 4
          %s147 = int_to_ptr.hbm [resolvable:$true] %s146
          %s148 = sshll.u32 %s140, 4
          %s149 = int_to_ptr.vmem [resolvable:$true] %s148
          %151 = dma.hbm_to_vmem [thread:$0]  %s147, 128, %s149, %s137
        $region24: #{tpu_custom_call.1} parent=15 // pred_fallthru
          _
      $region16: #{tpu_custom_call.1} parent=5 // pred_fallthru
        _
      %p152 = scmp.le.s32.totalorder 1, %s17
      %p153 = scmp.lt.s32.totalorder %s17, 4
      %p154 = pnand %p152, %p153
      %p155 = pneg %p154
      // Predicated region
      $region25: #{tpu_custom_call.1} parent=5 // pred_check
        _
      $region26: #{tpu_custom_call.1} parent=5 // pred_check_branch
        %157 = sbr.rel (%p154) target = $region28
      $region27: #{tpu_custom_call.1} parent=5 // pred_region
        %s158 = ssub.s32 %s17, 1
        %s159 = sand.u32 %s30, 1
        %s160 = scalar_lea.sflag [#allocation3], %s159
        %s161 = sand.u32 %s30, 1
        %s162 = smul.addr %s161, 8
        %s163 = scalar_lea.vmem [#allocation2], %s162
        // Predicated region
        $region29: #{tpu_custom_call.1} parent=27 // pred_check
          %p164 = pneg %p43
        $region30: #{tpu_custom_call.1} parent=27 // pred_check_branch
          %166 = sbr.rel (%p164) target = $region32
        $region31: #{tpu_custom_call.1} parent=27 // pred_region
          %168 = dma.done %s160, 128
        $region32: #{tpu_custom_call.1} parent=27 // pred_fallthru
          _
        %s169 = sand.u32 %s56, 1
        %s170 = scalar_lea.sflag [#allocation6], %s169
        %s171 = sand.u32 %s56, 1
        %s172 = smul.addr %s171, 8
        %s173 = scalar_lea.vmem [#allocation5], %s172
        // Predicated region
        $region33: #{tpu_custom_call.1} parent=27 // pred_check
          %p174 = pneg %p69
        $region34: #{tpu_custom_call.1} parent=27 // pred_check_branch
          %176 = sbr.rel (%p174) target = $region36
        $region35: #{tpu_custom_call.1} parent=27 // pred_region
          %178 = dma.done %s170, 128
        $region36: #{tpu_custom_call.1} parent=27 // pred_fallthru
          _
        %s179 = sand.u32 %s30, 1
        %s180 = scalar_lea.sflag [#allocation3], %s179
        %s181 = sand.u32 %s30, 1
        %s182 = smul.addr %s181, 8
        %s183 = scalar_lea.vmem [#allocation2], %s182
        %p184 = pneg %p43
        %p185 = pneg %p40
        %s186 = sand.u32 %s56, 1
        %s187 = scalar_lea.sflag [#allocation6], %s186
        %s188 = sand.u32 %s56, 1
        %s189 = smul.addr %s188, 8
        %s190 = scalar_lea.vmem [#allocation5], %s189
        %p191 = pneg %p69
        %p192 = pneg %p66
        %p193 = pneg %p95
        %p194 = pneg %p92
        %s195 = sand.u32 %s82, 1
        %s196 = scalar_lea.sflag [#allocation4], %s195
        %s197 = sand.u32 %s82, 1
        %s198 = smul.addr %s197, 8
        %s199 = scalar_lea.vmem [#allocation7], %s198
        %v200 = vld [vmem:[%s163] sm:$0xff]
        %v201 = vld [vmem:[%s173] sm:$0xff]
        %vm202 = vcmask 261120
        %v203 = vsel %vm202, %v201, 0.0
        %204 = vadd.xlane.f32.xlu0 %v203
        %v205 = vpop.xlane.xlu0 %204
        %v206 = vsel %vm202, %v200, -inf
        %207 = vmax.xlane.f32.xlu0 %v206
        %v208 = vpop.xlane.xlu0 %207
        %v209 = vsub.f32 %v200, %v208
        %v210 = vmul.f32 %v209, 1.442695
        %v211 = vpow.pop %v210
        %v212 = vsel %vm202, %v211, 0.0
        %213 = vadd.xlane.f32.xlu0 %v212
        %v214 = vpop.xlane.xlu0 %213
        %v215 = vlog2.pop %v214
        %v216 = vmul.f32 %v215, 0.6931472
        %vm217 = vcmp.gt.f32.partialorder %v201, 0.0
        %v218 = vsel %vm217, %v201, 1.0
        %v219 = vlog2.pop %v218
        %v220 = vmul.f32 %v219, 0.6931472
        %v221 = vmul.f32 %v201, %v220
        %v222 = vsel %vm202, %v221, 0.0
        %223 = vadd.xlane.f32.xlu0 %v222
        %v224 = vpop.xlane.xlu0 %223
        %v225 = vmul.f32 %v201, %v200
        %v226 = vsel %vm202, %v225, 0.0
        %227 = vadd.xlane.f32.xlu0 %v226
        %v228 = vpop.xlane.xlu0 %227
        %vm229 = vcmp.gt.f32.partialorder %v205, 0.0
        %v230 = vsel %vm229, %v205, 1.0
        %v231 = vsub.f32 %v224, %v228
        %v232 = vrcp.pop %v230
        %v233 = vmul.f32 %v230, %v232
        %v234 = vsub.f32 1.0, %v233
        %v235 = vmul.f32 %v232, %v234
        %v236 = vadd.f32 %v232, %v235
        %vm237 = vweird.f32 %v230
        %vm238 = vweird.f32 %v232
        %vm239 = vmor %vm237, %vm238
        %v240 = vsel %vm239, %v232, %v236
        %v241 = vand.u32 2147483647, %v230
        %vm242 = vcmp.eq.f32.partialorder %v241, 8.507059e+37
        %v243 = vand.u32 %v230, 2147483648
        %v244 = vor.u32 1.1754944e-38, %v243
        %v245 = vsel %vm242, %v244, %v240
        %v246 = vmul.f32 %v231, %v245
        %v247 = vadd.f32 %v208, %v216
        %v248 = vlog2.pop %v230
        %v249 = vmul.f32 %v248, 0.6931472
        %v250 = vsub.f32 %v247, %v249
        %v251 = vadd.f32 %v246, %v250
        %v252 = vsel %vm229, %v251, 0.0
        %vm253 = vcmask 7168
        %v254 = vsel %vm253, %v252, 0.0
        %255 = vadd.xlane.f32.xlu0 %v254
        %v256 = vpop.xlane.xlu0 %255
        %v257 = vrot.slane %v256, 4
        %v258 = vadd.f32 %v256, %v257
        %v259 = vrot.slane %v258, 2
        %v260 = vadd.f32 %v258, %v259
        %v261 = vrot.slane %v260, 1
        %v262 = vadd.f32 %v260, %v261
        %s263 = vtos %v262
        %v264 = vstv %s263
        %265 = vst [vmem:[%s199] sm:$0xff] %v264
        %s266 = sand.u32 %s82, 1
        %s267 = scalar_lea.sflag [#allocation4], %s266
        %s268 = sand.u32 %s82, 1
        %s269 = smul.addr %s268, 8
        %s270 = scalar_lea.vmem [#allocation7], %s269
        // Predicated region
        $region37: #{tpu_custom_call.1} parent=27 // pred_check
          %p271 = pneg %p92
        $region38: #{tpu_custom_call.1} parent=27 // pred_check_branch
          %273 = sbr.rel (%p271) target = $region40
        $region39: #{tpu_custom_call.1} parent=27 // pred_region
          %275 = vsyncadd %s267, 0
          %s276 = smul.addr %s22, 8
          %s277 = scalar_lea.hbm %s2, %s276
          %s279 = sshll.u32 %s270, 4
          %s280 = int_to_ptr.vmem [resolvable:$true] %s279
          %s281 = sshll.u32 %s277, 4
          %s282 = int_to_ptr.hbm [resolvable:$true] %s281
          %284 = dma.vmem_to_hbm [thread:$0]  %s280, 128, %s282, %s267
        $region40: #{tpu_custom_call.1} parent=27 // pred_fallthru
          _
      $region28: #{tpu_custom_call.1} parent=5 // pred_fallthru
        _
      %p285 = scmp.le.s32.totalorder 2, %s17
      // Predicated region
      $region41: #{tpu_custom_call.1} parent=5 // pred_check
        %p286 = pneg %p285
      $region42: #{tpu_custom_call.1} parent=5 // pred_check_branch
        %288 = sbr.rel (%p286) target = $region44
      $region43: #{tpu_custom_call.1} parent=5 // pred_region
        %s289 = ssub.s32 %s17, 2
        // Predicated region
        $region45: #{tpu_custom_call.1} parent=43 // pred_check
          %p290 = pneg %p98
        $region46: #{tpu_custom_call.1} parent=43 // pred_check_branch
          %292 = sbr.rel (%p290) target = $region48
        $region47: #{tpu_custom_call.1} parent=43 // pred_region
          %s293 = sand.u32 %s83, 1
          %s294 = scalar_lea.sflag [#allocation4], %s293
          %s295 = sand.u32 %s83, 1
          %s296 = smul.addr %s295, 8
          %s297 = scalar_lea.vmem [#allocation7], %s296
          %299 = dma.done %s294, 128
        $region48: #{tpu_custom_call.1} parent=43 // pred_fallthru
          _
      $region44: #{tpu_custom_call.1} parent=5 // pred_fallthru
        _
    $region6: #{tpu_custom_call.1} parent=1 // loop_footer
      %s21 = sadd.s32 1, %s17
    $region7: #{tpu_custom_call.1} parent=1 // loop_footer_branch
      %16 = sbr.rel target = $region3
    $region8: #{tpu_custom_call.1} parent=1 // loop_exit
      _
    %300 = vsyncpa [#allocation3], 1
    %s301 = scalar_lea.sflag [#allocation3], 1
    %302 = vsyncpa %s301, 1
    %303 = vsyncpa [#allocation6], 1
    %s304 = scalar_lea.sflag [#allocation6], 1
    %305 = vsyncpa %s304, 1
    %306 = vsyncpa [#allocation4], 1
    %s307 = scalar_lea.sflag [#allocation4], 1
    %308 = vsyncpa %s307, 1

</llo_original>
